<compile_context>
chip_gen: v6e
topology: v6e:2x2x1
jax: 0.10.0
libtpu: 0.0.40
codegen_flags: <defaults>
</compile_context>

<pallas_src>
import jax
import jax.numpy as jnp
from jax import lax
from jax.experimental import pallas as pl
from jax.experimental.pallas import tpu as pltpu

EPS = 1e-5


# --------------------------------------------------------------------------
# helpers
# --------------------------------------------------------------------------
def _round_up(a, b):
    return ((a + b - 1) // b) * b


def _vmem_capacity_bytes():
    """Physical VMEM per core; conservative (v7x = 64 MiB) if query fails."""
    try:
        info = pltpu.get_tpu_info()
        cap = getattr(info, "vmem_capacity_bytes", None)
        if cap:
            return int(cap)
    except Exception:
        pass
    return 64 * 1024 * 1024


def _lane_tile_candidates(d_pad):
    """Lane-tile widths: multiples of 128 dividing d_pad (largest first)."""
    return sorted((t for t in range(128, d_pad + 1, 128) if d_pad % t == 0),
                  reverse=True)


def _chunk_rows(n_rows, td):
    """Row chunk for in-kernel streaming: bounds f32 temporaries to ~1 MiB."""
    del n_rows
    c = (1 << 20) // (4 * td)
    return max(8, min(512, (c // 8) * 8))


# --------------------------------------------------------------------------
# kernels
# --------------------------------------------------------------------------
def _make_onepass_kernel(n_rows, chunk):
    """Whole-N column slab, streamed in row chunks (no slab-sized f32 temps)."""
    inv_n = 1.0 / float(n_rows)
    n_full = n_rows // chunk
    rem = n_rows - n_full * chunk

    def kernel(x_ref, gamma_ref, beta_ref, o_ref):
        # Per-column shift (row 0) mitigates E[x^2]-mean^2 cancellation.
        c = x_ref[0:1, :].astype(jnp.float32)

        def chunk_stats(start, size, carry):
            s, ssq = carry
            xr = x_ref[pl.ds(start, size), :].astype(jnp.float32) - c
            return (s + jnp.sum(xr, axis=0, keepdims=True),
                    ssq + jnp.sum(xr * xr, axis=0, keepdims=True))

        carry = (jnp.zeros_like(c), jnp.zeros_like(c))
        if n_full > 0:
            carry = lax.fori_loop(
                0, n_full,
                lambda i, cr: chunk_stats(
                    pl.multiple_of(i * chunk, chunk), chunk, cr),
                carry)
        if rem > 0:
            carry = chunk_stats(n_full * chunk, rem, carry)
        s, ssq = carry

        m = s * inv_n                                   # mean of residuals
        var = jnp.maximum(ssq * inv_n - m * m, 0.0)
        mean = c + m
        scale = lax.rsqrt(var + EPS) * gamma_ref[...]
        shift = beta_ref[...] - mean * scale

        def write_chunk(start, size):
            xc = x_ref[pl.ds(start, size), :].astype(jnp.float32)
            o_ref[pl.ds(start, size), :] = (xc * scale + shift).astype(o_ref.dtype)

        if n_full > 0:
            @pl.loop(0, n_full)
            def _(i):
                write_chunk(pl.multiple_of(i * chunk, chunk), chunk)
        if rem > 0:
            write_chunk(n_full * chunk, rem)

    return kernel


def _make_stats_kernel(n_total, tn, n_tiles):
    """Two-pass, pass 1: shifted per-feature sum/ssq with fused scale/shift."""
    inv_n = 1.0 / float(n_total)
    needs_mask = (n_total % tn) != 0

    def kernel(x_ref, gamma_ref, beta_ref, scale_ref, shift_ref,
               sum_sc, ssq_sc, c_sc):
        # grid = (d_tiles, n_tiles); reduction axis (n) last.
        n = pl.program_id(1)

        @pl.when(n == 0)
        def _():
            c_sc[...] = x_ref[0:1, :].astype(jnp.float32)   # per-feature shift
            sum_sc[...] = jnp.zeros_like(sum_sc)
            ssq_sc[...] = jnp.zeros_like(ssq_sc)

        def accumulate(xv):
            sum_sc[...] += jnp.sum(xv, axis=0, keepdims=True)
            ssq_sc[...] += jnp.sum(xv * xv, axis=0, keepdims=True)

        if needs_mask:
            is_last = n == n_tiles - 1

            @pl.when(jnp.logical_not(is_last))
            def _():   # unmasked fast path on full tiles
                accumulate(x_ref[...].astype(jnp.float32) - c_sc[...])

            @pl.when(is_last)
            def _():   # mask only the last, partial tile
                xv = x_ref[...].astype(jnp.float32) - c_sc[...]
                row = n * tn + lax.broadcasted_iota(jnp.int32, xv.shape, 0)
                accumulate(jnp.where(row < n_total, xv, 0.0))
        else:
            accumulate(x_ref[...].astype(jnp.float32) - c_sc[...])

        # Fused per-feature epilogue: emit scale/shift directly.
        @pl.when(n == n_tiles - 1)
        def _():
            m = sum_sc[...] * inv_n
            var = jnp.maximum(ssq_sc[...] * inv_n - m * m, 0.0)
            mean = c_sc[...] + m
            scale = lax.rsqrt(var + EPS) * gamma_ref[...]
            scale_ref[...] = scale
            shift_ref[...] = beta_ref[...] - mean * scale

    return kernel


def _norm_kernel(x_ref, scale_ref, shift_ref, o_ref):
    """Two-pass, pass 2: y = x * scale + shift."""
    x = x_ref[...].astype(jnp.float32)
    o_ref[...] = (x * scale_ref[...] + shift_ref[...]).astype(o_ref.dtype)


# --------------------------------------------------------------------------
# pallas_call wrappers
# --------------------------------------------------------------------------
def _sequence_bn_one_pass(x2, gamma2, beta2, td, chunk, vmem_limit, donate):
    N, D = x2.shape
    itemsize = jnp.dtype(x2.dtype).itemsize

    return pl.pallas_call(
        _make_onepass_kernel(N, chunk),
        out_shape=jax.ShapeDtypeStruct((N, D), x2.dtype),
        grid_spec=pltpu.PrefetchScalarGridSpec(
            num_scalar_prefetch=0,
            grid=(D // td,),
            in_specs=[
                pl.BlockSpec((N, td), lambda j: (0, j)),
                pl.BlockSpec((1, td), lambda j: (0, j)),
                pl.BlockSpec((1, td), lambda j: (0, j)),
            ],
            out_specs=pl.BlockSpec((N, td), lambda j: (0, j)),
        ),
        compiler_params=pltpu.CompilerParams(
            dimension_semantics=("parallel",),
            vmem_limit_bytes=int(vmem_limit),
        ),
        cost_estimate=pl.CostEstimate(
            flops=int(9 * N * D),
            transcendentals=int(D),
            bytes_accessed=int(2 * N * D * itemsize + 12 * D),
        ),
        input_output_aliases=({0: 0} if donate else {}),
    )(x2, gamma2, beta2)


def _pick_two_pass_tiles(N, D, cands, itemsize, tile_budget):
    # Prefer d_tiles >= 2 so both v7x TensorCores get work on the stats
    # (N-reduction) pass; on 128 MiB parts the cost of the narrower lane tile
    # is small.  Guaranteed fallback to a tiny always-fitting tile.
    pref = [t for t in cands if D // t >= 2] or list(cands)

    def fits(tn, td):
        # 2x in + 2x out double buffers + f32 temporaries (+ per-feature rows)
        return tn * td * (4 * itemsize + 8) + 64 * td <= tile_budget

    max_tn = N if N < 8 else (N // 8) * 8
    tn_opts = [t for t in (2048, 1024, 512, 256, 128, 64, 32, 16, 8)
               if t <= max_tn] or [max_tn]

    best = None
    for td in pref:                                   # descending lane widths
        fit_tn = next((tn for tn in tn_opts if fits(tn, td)), None)
        if fit_tn is None:
            continue
        if fit_tn >= 512:
            return fit_tn, td
        if best is None:
            best = (fit_tn, td)
    if best is not None:
        return best
    return tn_opts[-1], cands[-1]                     # (<=8, 128): always fits


def _sequence_bn_two_pass(x2, gamma2, beta2, cands, tile_budget, vmem_limit,
                          donate):
    N, D = x2.shape
    itemsize = jnp.dtype(x2.dtype).itemsize

    tn, td = _pick_two_pass_tiles(N, D, cands, itemsize, tile_budget)
    d_tiles = D // td
    n_tiles = -(-N // tn)          # ceil div; last row tile masked if partial

    # ---- pass 1: shifted per-feature stats + fused scale/shift epilogue ----
    scale, shift = pl.pallas_call(
        _make_stats_kernel(N, tn, n_tiles),
        out_shape=(
            jax.ShapeDtypeStruct((1, D), jnp.float32),
            jax.ShapeDtypeStruct((1, D), jnp.float32),
        ),
        grid_spec=pltpu.PrefetchScalarGridSpec(
            num_scalar_prefetch=0,
            grid=(d_tiles, n_tiles),
            in_specs=[
                pl.BlockSpec((tn, td), lambda j, n: (n, j)),
                pl.BlockSpec((1, td), lambda j, n: (0, j)),
                pl.BlockSpec((1, td), lambda j, n: (0, j)),
            ],
            out_specs=[
                pl.BlockSpec((1, td), lambda j, n: (0, j)),
                pl.BlockSpec((1, td), lambda j, n: (0, j)),
            ],
            scratch_shapes=[pltpu.VMEM((1, td), jnp.float32)] * 3,
        ),
        compiler_params=pltpu.CompilerParams(
            dimension_semantics=("parallel", "arbitrary"),
            vmem_limit_bytes=int(vmem_limit),
        ),
        cost_estimate=pl.CostEstimate(
            flops=int(4 * N * D),
            transcendentals=int(D),
            bytes_accessed=int(N * D * itemsize + 16 * D),
        ),
    )(x2, gamma2, beta2)

    # ---- pass 2: normalize ------------------------------------------------
    out2 = pl.pallas_call(
        _norm_kernel,
        out_shape=jax.ShapeDtypeStruct((N, D), x2.dtype),
        grid_spec=pltpu.PrefetchScalarGridSpec(
            num_scalar_prefetch=0,
            grid=(d_tiles, n_tiles),
            in_specs=[
                pl.BlockSpec((tn, td), lambda j, n: (n, j)),
                pl.BlockSpec((1, td), lambda j, n: (0, j)),
                pl.BlockSpec((1, td), lambda j, n: (0, j)),
            ],
            out_specs=pl.BlockSpec((tn, td), lambda j, n: (n, j)),
        ),
        compiler_params=pltpu.CompilerParams(
            dimension_semantics=("parallel", "parallel"),
            vmem_limit_bytes=int(vmem_limit),
        ),
        cost_estimate=pl.CostEstimate(
            flops=int(2 * N * D),
            transcendentals=0,
            bytes_accessed=int(2 * N * D * itemsize + 8 * D),
        ),
        input_output_aliases=({0: 0} if donate else {}),
    )(x2, scale, shift)
    return out2


# --------------------------------------------------------------------------
# public entry point
# --------------------------------------------------------------------------
def sequence_bn(x, gamma, beta, *, vmem_budget_bytes=None,
                force_two_pass=False, donate_x=False):
    """x: (..., D); gamma, beta: (D,). Returns same shape/dtype as x."""
    shape = x.shape
    D = shape[-1]
    x2 = x.reshape(-1, D)          # '... d -> (...) d'
    N = x2.shape[0]
    itemsize = jnp.dtype(x.dtype).itemsize

    gamma2 = jnp.asarray(gamma, jnp.float32).reshape(1, D)
    beta2 = jnp.asarray(beta, jnp.float32).reshape(1, D)

    # Lane-dense padding: pad D to a multiple of 128.  Padded columns are
    # inert (x = 0, gamma = 0 -> y = 0) and are sliced off at the end.
    D_pad = _round_up(D, 128)
    if D_pad != D:
        x2 = jnp.pad(x2, ((0, 0), (0, D_pad - D)))
        gamma2 = jnp.pad(gamma2, ((0, 0), (0, D_pad - D)))
        beta2 = jnp.pad(beta2, ((0, 0), (0, D_pad - D)))

    # Per-generation VMEM budget: ~75% of physical, capped at 100 MiB
    # (v5e/v6e: 128 MiB physical -> 96 MiB; v7x: 64 MiB -> 48 MiB).
    vmem_limit = min(_vmem_capacity_bytes() * 3 // 4, 100 * 1024 * 1024)
    if vmem_budget_bytes is not None:
        vmem_limit = int(vmem_budget_bytes)
    tile_budget = int(vmem_limit * 0.8)

    cands = _lane_tile_candidates(D_pad)

    def fits_one_pass(t):
        ch = min(_chunk_rows(N, t), N)
        # 2x in + 2x out double buffers + chunk-bounded f32 temporaries
        return 4 * N * t * itemsize + 16 * ch * t + 64 * t <= tile_budget

    one_pass_fits = [t for t in cands if fits_one_pass(t)]

    if one_pass_fits and not force_two_pass:
        # Prefer >=4 grid steps (>=2 per v7x TensorCore) so input prefetch of
        # step i+1 overlaps compute/writeback of step i; fall back to >=2.
        td = next((t for t in one_pass_fits if D_pad // t >= 4),
                  next((t for t in one_pass_fits if D_pad // t >= 2),
                       one_pass_fits[0]))
        out2 = _sequence_bn_one_pass(x2, gamma2, beta2, td,
                                     _chunk_rows(N, td), vmem_limit, donate_x)
    else:
        out2 = _sequence_bn_two_pass(x2, gamma2, beta2, cands, tile_budget,
                                     vmem_limit, donate_x)

    if D_pad != D:
        out2 = out2[:, :D]
    return out2.reshape(shape)


# --------------------------------------------------------------------------
# reference + test
# --------------------------------------------------------------------------
def _reference(x, gamma, beta):
    shape = x.shape
    x2 = x.reshape(-1, shape[-1]).astype(jnp.float32)
    mean = jnp.mean(x2, axis=0, keepdims=True)
    var = jnp.mean((x2 - mean) ** 2, axis=0, keepdims=True)
    y = (x2 - mean) / jnp.sqrt(var + EPS) * gamma[None, :] + beta[None, :]
    return y.reshape(shape).astype(x.dtype)


if __name__ == "__main__":
    key = jax.random.PRNGKey(0)
    kx, kg, kb, kx2, kx3 = jax.random.split(key, 5)

    # --- Test 1: spec-like small shape (batch=2, seq=8, dim=32) -----------
    # Exercises lane-dense padding (32 -> 128) and the one-pass path.
    dim = 32
    x = jax.random.normal(kx, (2, 8, dim), dtype=jnp.float32)
    gamma = 1.0 + 0.1 * jax.random.normal(kg, (dim,), dtype=jnp.float32)
    beta = 0.1 * jax.random.normal(kb, (dim,), dtype=jnp.float32)

    y = jax.block_until_ready(sequence_bn(x, gamma, beta))
    y_ref = _reference(x, gamma, beta)
    assert y.shape == x.shape and y.dtype == x.dtype
    assert jnp.allclose(y, y_ref, atol=1e-4, rtol=1e-4), float(
        jnp.max(jnp.abs(y - y_ref)))

    # --- Test 2: two-pass fallback, offset-heavy data, partial row tile ----
    dim2 = 256
    x_big = 8.0 + jax.random.normal(kx2, (4, 525, dim2), dtype=jnp.float32)
    gamma_big = 1.0 + 0.05 * jnp.arange(dim2, dtype=jnp.float32) / dim2
    beta_big = 0.01 * jnp.arange(dim2, dtype=jnp.float32)

    y_big = jax.block_until_ready(
        sequence_bn(x_big, gamma_big, beta_big, force_two_pass=True))
    y_big_ref = _reference(x_big, gamma_big, beta_big)
    assert y_big.shape == x_big.shape and y_big.dtype == x_big.dtype
    assert jnp.allclose(y_big, y_big_ref, atol=1e-4, rtol=1e-4), float(
        jnp.max(jnp.abs(y_big - y_big_ref)))

    # --- Test 3: chunked one-pass (multi d-tile, fori_loop + remainder),
    #             donated input ------------------------------------------------
    dim3 = 512
    x3 = jax.random.normal(kx3, (3, 600, dim3), dtype=jnp.float32)
    gamma3 = 1.0 + 0.02 * jnp.arange(dim3, dtype=jnp.float32) / dim3
    beta3 = 0.05 * jnp.arange(dim3, dtype=jnp.float32) / dim3
    y3_ref = _reference(x3, gamma3, beta3)

    y3 = jax.block_until_ready(sequence_bn(x3, gamma3, beta3, donate_x=True))
    assert y3.shape == x3.shape and y3.dtype == x3.dtype
    assert jnp.allclose(y3, y3_ref, atol=1e-4, rtol=1e-4), float(
        jnp.max(jnp.abs(y3 - y3_ref)))

    print("KERNEL_OK")
</pallas_src>

<mosaic_0001>
module attributes {stable_mosaic.version = 11 : i64} {
  func.func @kernel(%arg0: i32, %arg1: memref<16x128xf32, #tpu.memory_space<vmem>>, %arg2: memref<1x128xf32, #tpu.memory_space<vmem>>, %arg3: memref<1x128xf32, #tpu.memory_space<vmem>>, %arg4: memref<16x128xf32, #tpu.memory_space<vmem>>) attributes {dimension_semantics = [#tpu.dimension_semantics<parallel>], iteration_bounds = array<i64: 1>, scalar_prefetch = 0 : i64, scratch_operands = 0 : i64, tpu.core_type = #tpu.core_type<tc>, window_params = [{transform_indices = @transform_0, window_bounds = array<i64: 16, 128>}, {transform_indices = @transform_1, window_bounds = array<i64: 1, 128>}, {transform_indices = @transform_2, window_bounds = array<i64: 1, 128>}, {transform_indices = @transform_3, window_bounds = array<i64: 16, 128>}]} {
    %c0 = arith.constant 0 : index
    %c0_0 = arith.constant 0 : index
    %0 = vector.load %arg1[%c0, %c0_0] : memref<16x128xf32, #tpu.memory_space<vmem>>, vector<1x128xf32>
    %cst = arith.constant 0.000000e+00 : f32
    %1 = vector.broadcast %cst : f32 to vector<1x128xf32>
    %cst_1 = arith.constant 0.000000e+00 : f32
    %2 = vector.broadcast %cst_1 : f32 to vector<1x128xf32>
    %c0_2 = arith.constant 0 : index
    %c0_3 = arith.constant 0 : index
    %3 = vector.load %arg1[%c0_2, %c0_3] : memref<16x128xf32, #tpu.memory_space<vmem>>, vector<16x128xf32>
    %4 = vector.broadcast %0 : vector<1x128xf32> to vector<16x128xf32>
    %5 = arith.subf %3, %4 : vector<16x128xf32>
    %cst_4 = arith.constant dense<0.000000e+00> : vector<128xf32>
    %6 = vector.multi_reduction <add>, %5, %cst_4 [0] : vector<16x128xf32> to vector<128xf32>
    %7 = vector.shape_cast %6 : vector<128xf32> to vector<1x128xf32>
    %8 = arith.addf %1, %7 : vector<1x128xf32>
    %9 = arith.mulf %5, %5 : vector<16x128xf32>
    %cst_5 = arith.constant dense<0.000000e+00> : vector<128xf32>
    %10 = vector.multi_reduction <add>, %9, %cst_5 [0] : vector<16x128xf32> to vector<128xf32>
    %11 = vector.shape_cast %10 : vector<128xf32> to vector<1x128xf32>
    %12 = arith.addf %2, %11 : vector<1x128xf32>
    %cst_6 = arith.constant 6.250000e-02 : f32
    %13 = vector.broadcast %cst_6 : f32 to vector<1x128xf32>
    %14 = arith.mulf %8, %13 : vector<1x128xf32>
    %cst_7 = arith.constant 6.250000e-02 : f32
    %15 = vector.broadcast %cst_7 : f32 to vector<1x128xf32>
    %16 = arith.mulf %12, %15 : vector<1x128xf32>
    %17 = arith.mulf %14, %14 : vector<1x128xf32>
    %18 = arith.subf %16, %17 : vector<1x128xf32>
    %cst_8 = arith.constant 0.000000e+00 : f32
    %19 = vector.broadcast %cst_8 : f32 to vector<1x128xf32>
    %20 = arith.maximumf %18, %19 : vector<1x128xf32>
    %21 = arith.addf %0, %14 : vector<1x128xf32>
    %cst_9 = arith.constant 9.99999974E-6 : f32
    %22 = vector.broadcast %cst_9 : f32 to vector<1x128xf32>
    %23 = arith.addf %20, %22 : vector<1x128xf32>
    %24 = math.rsqrt %23 : vector<1x128xf32>
    %c0_10 = arith.constant 0 : index
    %c0_11 = arith.constant 0 : index
    %25 = vector.load %arg2[%c0_10, %c0_11] : memref<1x128xf32, #tpu.memory_space<vmem>>, vector<1x128xf32>
    %26 = arith.mulf %24, %25 : vector<1x128xf32>
    %c0_12 = arith.constant 0 : index
    %c0_13 = arith.constant 0 : index
    %27 = vector.load %arg3[%c0_12, %c0_13] : memref<1x128xf32, #tpu.memory_space<vmem>>, vector<1x128xf32>
    %28 = arith.mulf %21, %26 : vector<1x128xf32>
    %29 = arith.subf %27, %28 : vector<1x128xf32>
    %c0_14 = arith.constant 0 : index
    %c0_15 = arith.constant 0 : index
    %30 = vector.load %arg1[%c0_14, %c0_15] : memref<16x128xf32, #tpu.memory_space<vmem>>, vector<16x128xf32>
    %31 = vector.broadcast %26 : vector<1x128xf32> to vector<16x128xf32>
    %32 = arith.mulf %30, %31 : vector<16x128xf32>
    %33 = vector.broadcast %29 : vector<1x128xf32> to vector<16x128xf32>
    %34 = arith.addf %32, %33 : vector<16x128xf32>
    %c0_16 = arith.constant 0 : index
    %c0_17 = arith.constant 0 : index
    %35 = vector.load %arg4[%c0_16, %c0_17] : memref<16x128xf32, #tpu.memory_space<vmem>>, vector<16x128xf32>
    tpu.vector_store %arg4[%c0_16, %c0_17], %34 {strides = array<i32>} : memref<16x128xf32, #tpu.memory_space<vmem>>, vector<16x128xf32>,
    return
  }
  func.func @transform_0(%arg0: i32) -> (i32, i32) {
    %c0_i32 = arith.constant 0 : i32
    %c0_i32_0 = arith.constant 0 : i32
    return %c0_i32, %arg0 : i32, i32
  }
  func.func @transform_1(%arg0: i32) -> (i32, i32) {
    %c0_i32 = arith.constant 0 : i32
    %c0_i32_0 = arith.constant 0 : i32
    return %c0_i32, %arg0 : i32, i32
  }
  func.func @transform_2(%arg0: i32) -> (i32, i32) {
    %c0_i32 = arith.constant 0 : i32
    %c0_i32_0 = arith.constant 0 : i32
    return %c0_i32, %arg0 : i32, i32
  }
  func.func @transform_3(%arg0: i32) -> (i32, i32) {
    %c0_i32 = arith.constant 0 : i32
    %c0_i32_0 = arith.constant 0 : i32
    return %c0_i32, %arg0 : i32, i32
  }
}

</mosaic_0001>

<llo_original>
// kernel: tpu_custom_call.1
$region0: #{tpu_custom_call.1}
  #allocation0 [shape = 'u32[]', space=smem, size = 0x4, offset = 0x4, fixed_abs, tag = 'smem constant byte address 0x4 - core index']
  #allocation1 [shape = 'u32[144,128]{1,0:T(1,128)}', space=vmem, size = 0x12000, scoped, tag = 'internal scratch']
  %s0 = inlined_call_operand.hbm [shape: f32[16,128], index: 0, kind: input, shape index: {}]
  %s1 = inlined_call_operand.vmem [shape: f32[1,128], index: 1, kind: input, shape index: {}]
  %s2 = inlined_call_operand.vmem [shape: f32[1,128], index: 2, kind: input, shape index: {}]
  %s3 = inlined_call_operand.hbm [shape: f32[16,128], index: 3, kind: output, shape index: {}]
  %s4 = sld [smem:[#allocation0]]
  $region26: #{tpu_custom_call.1} parent=0
    _
  %s6 = ssub.s32 1, %s4
  %s7 = scalar_select 0, %s6, %s4
  $region1: #{tpu_custom_call.1} parent=0
    #allocation2 [shape = 'u8[8192]{0}', space=vmem, size = 0x2000, scoped, tag = 'input window, operand 0, single buffered']
    #allocation3 [shape = 's32[1]{0}', space=sflag, size = 0x4, scoped, tag = 'scoped memory for tpu_custom_call.1']
    #allocation4 [shape = 's32[1]{0}', space=sflag, size = 0x4, scoped, tag = 'scoped memory for tpu_custom_call.1']
    #allocation5 [shape = 'u8[8192]{0}', space=vmem, size = 0x2000, scoped, tag = 'output window, operand 0, single buffered']
    %8 = vsyncpa [#allocation3], 0
    %9 = vsyncpa [#allocation4], 0
    // Predicated region
    $region2: #{tpu_custom_call.1} parent=1 // pred_check
      _
    $region3: #{tpu_custom_call.1} parent=1 // pred_check_branch
      %11 = sbr.rel (0) target = $region5
    $region4: #{tpu_custom_call.1} parent=1 // pred_region
      %s13 = ssub.s32 256, 256
      %14 = vsyncadd [#allocation3], %s13
      %s15 = sshll.u32 [#allocation2], 4
      %s16 = int_to_ptr.vmem [resolvable:$true] %s15
      %21 = dma.hbm_to_vmem [thread:$0]  %s0, 256, %s16, [#allocation3], 128, 128, 8
    $region5: #{tpu_custom_call.1} parent=1 // pred_fallthru
      _
    // Predicated region
    $region6: #{tpu_custom_call.1} parent=1 // pred_check
      _
    $region7: #{tpu_custom_call.1} parent=1 // pred_check_branch
      %23 = sbr.rel (0) target = $region9
    $region8: #{tpu_custom_call.1} parent=1 // pred_region
      _
    $region9: #{tpu_custom_call.1} parent=1 // pred_fallthru
      _
    // Predicated region
    $region10: #{tpu_custom_call.1} parent=1 // pred_check
      _
    $region11: #{tpu_custom_call.1} parent=1 // pred_check_branch
      %25 = sbr.rel (0) target = $region13
    $region12: #{tpu_custom_call.1} parent=1 // pred_region
      _
    $region13: #{tpu_custom_call.1} parent=1 // pred_fallthru
      _
    // Predicated region
    $region14: #{tpu_custom_call.1} parent=1 // pred_check
      _
    $region15: #{tpu_custom_call.1} parent=1 // pred_check_branch
      %27 = sbr.rel (0) target = $region17
    $region16: #{tpu_custom_call.1} parent=1 // pred_region
      %28 = dma.done [#allocation3], 256
    $region17: #{tpu_custom_call.1} parent=1 // pred_fallthru
      _
    %v29 = vld [vmem:[#allocation2] sm:$0x1]
    %v30 = vld [vmem:[#allocation2] sm:$0xff]
    %v31 = vld [vmem:[#allocation2 + $0x8] sm:$0xff]
    %v32 = vlaneseq
    %v33 = vshrl.u32 %v32, 7
    %v34 = vsub.s32 0, %v33
    %v35 = vrot.slane %v29, %v34
    %v36 = vsub.f32 %v30, %v35
    %v37 = vsub.f32 %v31, %v35
    %v38 = vadd.f32 %v36, %v37
    %v39 = vrot.slane %v38, 4
    %v40 = vadd.f32 %v38, %v39
    %v41 = vrot.slane %v40, 2
    %v42 = vadd.f32 %v40, %v41
    %v43 = vrot.slane %v42, 1
    %v44 = vadd.f32 %v42, %v43
    %v45 = vadd.f32 %v44, 0.0
    %v46 = vmul.f32 %v36, %v36
    %v47 = vmul.f32 %v37, %v37
    %v48 = vadd.f32 %v46, %v47
    %v49 = vrot.slane %v48, 4
    %v50 = vadd.f32 %v48, %v49
    %v51 = vrot.slane %v50, 2
    %v52 = vadd.f32 %v50, %v51
    %v53 = vrot.slane %v52, 1
    %v54 = vadd.f32 %v52, %v53
    %v55 = vadd.f32 %v54, 0.0
    %v56 = vmul.f32 %v45, 0.0625
    %v57 = vmul.f32 %v55, 0.0625
    %v58 = vmul.f32 %v56, %v56
    %v59 = vsub.f32 %v57, %v58
    %v60 = vmax.f32 %v59, 0.0
    %v61 = vadd.f32 %v29, %v56
    %v62 = vadd.f32 %v60, 1e-05
    %v63 = vrsqrt.pop %v62
    %v64 = vld [vmem:[%s1] sm:$0x1]
    %v65 = vmul.f32 %v63, %v64
    %v66 = vld [vmem:[%s2] sm:$0x1]
    %v67 = vmul.f32 %v61, %v65
    %v68 = vsub.f32 %v66, %v67
    %v69 = vlaneseq
    %v70 = vshrl.u32 %v69, 7
    %v71 = vsub.s32 0, %v70
    %v72 = vrot.slane %v65, %v71
    %v73 = vmul.f32 %v30, %v72
    %v74 = vmul.f32 %v31, %v72
    %v76 = vlaneseq
    %v77 = vshrl.u32 %v76, 7
    %v78 = vsub.s32 0, %v77
    %v79 = vrot.slane %v68, %v78
    %v81 = vadd.f32 %v73, %v79
    %v82 = vadd.f32 %v74, %v79
    %83 = vst [vmem:[#allocation5] sm:$0xff] %v81
    %84 = vst [vmem:[#allocation5 + $0x8] sm:$0xff] %v82
    // Predicated region
    $region18: #{tpu_custom_call.1} parent=1 // pred_check
      _
    $region19: #{tpu_custom_call.1} parent=1 // pred_check_branch
      %86 = sbr.rel (0) target = $region21
    $region20: #{tpu_custom_call.1} parent=1 // pred_region
      %s88 = ssub.s32 256, 256
      %89 = vsyncadd [#allocation4], %s88
      %s90 = sshll.u32 [#allocation5], 4
      %s91 = int_to_ptr.vmem [resolvable:$true] %s90
      %96 = dma.vmem_to_hbm [thread:$0]  %s91, 256, %s3, [#allocation4], 128, 128, 8
    $region21: #{tpu_custom_call.1} parent=1 // pred_fallthru
      _
    // Predicated region
    $region22: #{tpu_custom_call.1} parent=1 // pred_check
      _
    $region23: #{tpu_custom_call.1} parent=1 // pred_check_branch
      %98 = sbr.rel (0) target = $region25
    $region24: #{tpu_custom_call.1} parent=1 // pred_region
      %99 = dma.done [#allocation4], 256
    $region25: #{tpu_custom_call.1} parent=1 // pred_fallthru
      _
    %100 = vsyncpa [#allocation3], 1
    %101 = vsyncpa [#allocation4], 1

</llo_original>
